<compile_context>
chip_gen: v7x
topology: tpu7x:2x2x1
jax: 0.10.0
libtpu: 0.0.40
codegen_flags: <defaults>
</compile_context>

<pallas_src>
import functools
import math

import jax
import jax.numpy as jnp
from jax import lax
from jax.experimental import pallas as pl
from jax.experimental.pallas import tpu as pltpu
import numpy as np

_L = 128          # block-lift length = lane width = MXU contraction dim
_MAX_TT = 1024    # time tile (8 blocks); ~2-4 MiB of pipeline buffers


def lowpass_biquad_coeffs(sample_rate, cutoff_freq, q_val):
    w0 = 2.0 * math.pi * cutoff_freq / sample_rate
    alpha = math.sin(w0) / (2.0 * q_val)
    b0 = (1.0 - math.cos(w0)) / 2.0
    b1 = 1.0 - math.cos(w0)
    b2 = b0
    a0 = 1.0 + alpha
    a1 = -2.0 * math.cos(w0)
    a2 = 1.0 - alpha
    # lfilter normalizes everything by a0
    return b0 / a0, b1 / a0, b2 / a0, a1 / a0, a2 / a0


def _block_lift_coeffs(b0, b1, b2, a1, a2, L=_L):
    """Exact block-lifted biquad (built at trace time in float64):

        y[t0+k] = sum_j CX[k, j] * x[t0+j]
                + CS[k, :] @ [y[t0-1], y[t0-2], x[t0-1], x[t0-2]]
    """
    CX = np.zeros((L, L), np.float64)
    CS = np.zeros((L, 4), np.float64)

    def y_at(k):
        if k == -1:
            return np.array([1.0, 0.0, 0.0, 0.0]), np.zeros(L)
        if k == -2:
            return np.array([0.0, 1.0, 0.0, 0.0]), np.zeros(L)
        return CS[k].copy(), CX[k].copy()

    def x_at(k):
        if k == -1:
            return np.array([0.0, 0.0, 1.0, 0.0]), np.zeros(L)
        if k == -2:
            return np.array([0.0, 0.0, 0.0, 1.0]), np.zeros(L)
        v = np.zeros(L)
        v[k] = 1.0
        return np.zeros(4), v

    for k in range(L):
        sx1, vx1 = x_at(k - 1)
        sx2, vx2 = x_at(k - 2)
        sy1, vy1 = y_at(k - 1)
        sy2, vy2 = y_at(k - 2)
        CS[k] = b1 * sx1 + b2 * sx2 - a1 * sy1 - a2 * sy2
        CX[k] = b1 * vx1 + b2 * vx2 - a1 * vy1 - a2 * vy2
        CX[k, k] += b0

    cxT = CX.T.astype(np.float32)                    # (L, L): y = x @ CX^T
    csT = np.zeros((8, L), np.float32)               # pad contraction dim 4 -> 8
    csT[:4, :] = CS.T.astype(np.float32)
    return cxT, csT


def _biquad_kernel(cxT_ref, csT_ref, x_ref, o_ref, state_ref, *, nblk):
    """Block-lifted biquad IIR over one (Rt, Tt) tile, FIR part on the MXU."""
    L = cxT_ref.shape[0]

    # Re-initialise filter state at the first time tile of every row block.
    @pl.when(pl.program_id(1) == 0)
    def _():
        state_ref[...] = jnp.zeros_like(state_ref)

    cxT = cxT_ref[...]            # (L, L)   constant FIR matrix (transposed)
    csT = csT_ref[...]            # (8, L)   constant state matrix (padded)
    st = state_ref[...]           # (Rt, 8)  columns: [y1, y2, x1, x2, 0, 0, 0, 0]

    # Static loop over 128-sample blocks; only the tiny state is serial.
    for blk in range(nblk):
        xb = x_ref[:, blk * L:(blk + 1) * L]                       # (Rt, L)
        acc = jnp.dot(xb, cxT, preferred_element_type=jnp.float32,
                      precision=lax.Precision.HIGHEST)
        acc = acc + jnp.dot(st, csT, preferred_element_type=jnp.float32,
                            precision=lax.Precision.HIGHEST)
        # torchaudio lfilter(clamp=True): only the *emitted* output is clipped;
        # the recursion carries the unclamped value.
        o_ref[:, blk * L:(blk + 1) * L] = jnp.clip(acc, -1.0, 1.0)
        st = jnp.concatenate(
            [acc[:, L - 1:L], acc[:, L - 2:L - 1],
             xb[:, L - 1:L], xb[:, L - 2:L - 1], st[:, 4:8]], axis=1)

    state_ref[...] = st


def _round_up(v, m):
    return ((v + m - 1) // m) * m


@functools.partial(jax.jit, static_argnums=(1, 2, 3))
def lowpass_filter(clip, sample_rate, cutoff, q_val):
    """clip: (B, C, T) float32 audio. Filters along the last (time) axis."""
    B, C, T = clip.shape
    R = B * C

    # Row (sublane) tiling: no 128-lane padding of R anymore.
    if R <= 128:
        Rt = _round_up(R, 8)
        R_pad = Rt
    else:
        Rt = 128
        R_pad = _round_up(R, 128)

    # Time (lane) tiling: multiple of L; aim for >= 2 time tiles on short
    # clips so the second tile's DMA overlaps the first tile's compute.
    n_lb = (T + _L - 1) // _L
    if n_lb * _L <= _MAX_TT:
        Tt = _L * max(1, (n_lb + 1) // 2)
    else:
        Tt = _MAX_TT
    T_pad = _round_up(max(T, Tt), Tt)
    nblk = Tt // _L

    # (B, C, T) -> (R_pad, T_pad): rows on sublanes, time on lanes (natural
    # layout, no transpose).
    x = clip.reshape(R, T).astype(jnp.float32)
    x = jnp.pad(x, ((0, R_pad - R), (0, T_pad - T)))

    b0, b1, b2, a1, a2 = lowpass_biquad_coeffs(sample_rate, cutoff, q_val)
    cxT_np, csT_np = _block_lift_coeffs(b0, b1, b2, a1, a2, L=_L)
    cxT = jnp.asarray(cxT_np)
    csT = jnp.asarray(csT_np)

    kernel = functools.partial(_biquad_kernel, nblk=nblk)

    # TODO(synk): for single-clip inputs (R <= 128) the "parallel" row axis has
    # one block, so v7x's second TensorCore idles; an overlap-save time split
    # (zero-state warm-up of a few hundred samples) would recover ~2x there.
    out = pl.pallas_call(
        kernel,
        out_shape=jax.ShapeDtypeStruct((R_pad, T_pad), jnp.float32),
        grid=(R_pad // Rt, T_pad // Tt),
        in_specs=[
            pl.BlockSpec((_L, _L), lambda r, t: (0, 0)),   # CX^T (constant)
            pl.BlockSpec((8, _L), lambda r, t: (0, 0)),    # CS^T (constant)
            pl.BlockSpec((Rt, Tt), lambda r, t: (r, t)),   # input tile
        ],
        out_specs=pl.BlockSpec((Rt, Tt), lambda r, t: (r, t)),
        scratch_shapes=[pltpu.VMEM((Rt, 8), jnp.float32)],
        compiler_params=pltpu.CompilerParams(
            dimension_semantics=("parallel", "arbitrary")),
    )(cxT, csT, x)

    return out[:R, :T].reshape(B, C, T)


def _reference_numpy(clip, sample_rate, cutoff, q_val):
    """Pure numpy re-implementation of torchaudio lowpass_biquad (clamp=True)."""
    b0, b1, b2, a1, a2 = lowpass_biquad_coeffs(sample_rate, cutoff, q_val)
    x = np.asarray(clip, dtype=np.float64)
    B, C, T = x.shape
    y = np.zeros_like(x)
    x1 = np.zeros((B, C)); x2 = np.zeros((B, C))
    y1 = np.zeros((B, C)); y2 = np.zeros((B, C))
    for t in range(T):
        xt = x[:, :, t]
        yt = b0 * xt + b1 * x1 + b2 * x2 - a1 * y1 - a2 * y2
        y[:, :, t] = yt
        x2, x1 = x1, xt
        y2, y1 = y1, yt
    return np.clip(y, -1.0, 1.0).astype(np.float32)


if __name__ == "__main__":
    # Deterministic config (cfg.sample_rate, cfg.lowpass_cutoff, cfg.lowpass_q_val)
    SAMPLE_RATE = 16000
    CUTOFF = 4000.0
    Q_VAL = 0.707

    key = jax.random.PRNGKey(0)
    # Small audio batch: (batch=2, channels=4, time=256)
    clip = jax.random.uniform(key, (2, 4, 256), dtype=jnp.float32,
                              minval=-1.0, maxval=1.0)

    out = lowpass_filter(clip, SAMPLE_RATE, CUTOFF, Q_VAL)
    out = jax.block_until_ready(out)

    ref = _reference_numpy(np.asarray(clip), SAMPLE_RATE, CUTOFF, Q_VAL)
    assert out.shape == clip.shape and out.dtype == jnp.float32
    np.testing.assert_allclose(np.asarray(out), ref, rtol=1e-4, atol=5e-5)

    print("KERNEL_OK")
</pallas_src>

<mosaic_0001>
module attributes {stable_mosaic.version = 11 : i64} {
  func.func @_biquad_kernel(%arg0: i32, %arg1: i32, %arg2: memref<128x128xf32, #tpu.memory_space<vmem>>, %arg3: memref<8x128xf32, #tpu.memory_space<vmem>>, %arg4: memref<8x128xf32, #tpu.memory_space<vmem>>, %arg5: memref<8x128xf32, #tpu.memory_space<vmem>>, %arg6: memref<8x8xf32, #tpu.memory_space<vmem>>) attributes {dimension_semantics = [#tpu.dimension_semantics<parallel>, #tpu.dimension_semantics<arbitrary>], iteration_bounds = array<i64: 1, 2>, scalar_prefetch = 0 : i64, scratch_operands = 1 : i64, tpu.core_type = #tpu.core_type<tc>, window_params = [{pipeline_mode = #tpu.pipeline_mode<synchronous>, transform_indices = @transform_0, window_bounds = array<i64: 128, 128>}, {pipeline_mode = #tpu.pipeline_mode<synchronous>, transform_indices = @transform_1, window_bounds = array<i64: 8, 128>}, {transform_indices = @transform_2, window_bounds = array<i64: 8, 128>}, {transform_indices = @transform_3, window_bounds = array<i64: 8, 128>}]} {
    %c0_i32 = arith.constant 0 : i32
    %0 = arith.cmpi eq, %arg1, %c0_i32 : i32
    %1 = arith.extui %0 : i1 to i32
    %c0_i32_0 = arith.constant 0 : i32
    %2 = arith.cmpi ne, %1, %c0_i32_0 : i32
    scf.if %2 {
      %cst_15 = arith.constant 0.000000e+00 : f32
      %22 = vector.broadcast %cst_15 : f32 to vector<8x8xf32>
      %c0_16 = arith.constant 0 : index
      %c0_17 = arith.constant 0 : index
      %23 = vector.load %arg6[%c0_16, %c0_17] : memref<8x8xf32, #tpu.memory_space<vmem>>, vector<8x8xf32>
      tpu.vector_store %arg6[%c0_16, %c0_17], %22 {strides = array<i32>} : memref<8x8xf32, #tpu.memory_space<vmem>>, vector<8x8xf32>,
    } else {
    }
    %c0 = arith.constant 0 : index
    %c0_1 = arith.constant 0 : index
    %3 = vector.load %arg2[%c0, %c0_1] : memref<128x128xf32, #tpu.memory_space<vmem>>, vector<128x128xf32>
    %c0_2 = arith.constant 0 : index
    %c0_3 = arith.constant 0 : index
    %4 = vector.load %arg3[%c0_2, %c0_3] : memref<8x128xf32, #tpu.memory_space<vmem>>, vector<8x128xf32>
    %c0_4 = arith.constant 0 : index
    %c0_5 = arith.constant 0 : index
    %5 = vector.load %arg6[%c0_4, %c0_5] : memref<8x8xf32, #tpu.memory_space<vmem>>, vector<8x8xf32>
    %c0_6 = arith.constant 0 : index
    %c0_7 = arith.constant 0 : index
    %6 = vector.load %arg4[%c0_6, %c0_7] : memref<8x128xf32, #tpu.memory_space<vmem>>, vector<8x128xf32>
    %cst = arith.constant dense<0.000000e+00> : vector<8x128xf32>
    %7 = tpu.matmul %6, %3, %cst {dimension_numbers = #tpu.dot_dimension_numbers<[1], [0], [0], [1], [0, 0, 1, 1], [], []>, precision = #tpu.contract_precision<fp32>} : vector<8x128xf32>, vector<128x128xf32>, vector<8x128xf32> -> vector<8x128xf32>
    %cst_8 = arith.constant dense<0.000000e+00> : vector<8x128xf32>
    %8 = tpu.matmul %5, %4, %cst_8 {dimension_numbers = #tpu.dot_dimension_numbers<[1], [0], [0], [1], [0, 0, 1, 1], [], []>, precision = #tpu.contract_precision<fp32>} : vector<8x8xf32>, vector<8x128xf32>, vector<8x128xf32> -> vector<8x128xf32>
    %9 = arith.addf %7, %8 : vector<8x128xf32>
    %cst_9 = arith.constant -1.000000e+00 : f32
    %cst_10 = arith.constant 1.000000e+00 : f32
    %10 = vector.broadcast %cst_9 : f32 to vector<8x128xf32>
    %11 = arith.maximumf %10, %9 : vector<8x128xf32>
    %12 = vector.broadcast %cst_10 : f32 to vector<8x128xf32>
    %13 = arith.minimumf %12, %11 : vector<8x128xf32>
    %c0_11 = arith.constant 0 : index
    %c0_12 = arith.constant 0 : index
    %14 = vector.load %arg5[%c0_11, %c0_12] : memref<8x128xf32, #tpu.memory_space<vmem>>, vector<8x128xf32>
    tpu.vector_store %arg5[%c0_11, %c0_12], %13 {strides = array<i32>} : memref<8x128xf32, #tpu.memory_space<vmem>>, vector<8x128xf32>,
    %15 = vector.extract_strided_slice %9 {offsets = [0, 127], sizes = [8, 1], strides = [1, 1]} : vector<8x128xf32> to vector<8x1xf32>
    %16 = vector.extract_strided_slice %9 {offsets = [0, 126], sizes = [8, 1], strides = [1, 1]} : vector<8x128xf32> to vector<8x1xf32>
    %17 = vector.extract_strided_slice %6 {offsets = [0, 127], sizes = [8, 1], strides = [1, 1]} : vector<8x128xf32> to vector<8x1xf32>
    %18 = vector.extract_strided_slice %6 {offsets = [0, 126], sizes = [8, 1], strides = [1, 1]} : vector<8x128xf32> to vector<8x1xf32>
    %19 = vector.extract_strided_slice %5 {offsets = [0, 4], sizes = [8, 4], strides = [1, 1]} : vector<8x8xf32> to vector<8x4xf32>
    %20 = tpu.concatenate %15, %16, %17, %18, %19 in 1 : vector<8x1xf32>, vector<8x1xf32>, vector<8x1xf32>, vector<8x1xf32>, vector<8x4xf32> -> vector<8x8xf32>
    %c0_13 = arith.constant 0 : index
    %c0_14 = arith.constant 0 : index
    %21 = vector.load %arg6[%c0_13, %c0_14] : memref<8x8xf32, #tpu.memory_space<vmem>>, vector<8x8xf32>
    tpu.vector_store %arg6[%c0_13, %c0_14], %20 {strides = array<i32>} : memref<8x8xf32, #tpu.memory_space<vmem>>, vector<8x8xf32>,
    return
  }
  func.func @transform_0(%arg0: i32, %arg1: i32) -> (i32, i32) {
    %c0_i32 = arith.constant 0 : i32
    %c0_i32_0 = arith.constant 0 : i32
    %c0_i32_1 = arith.constant 0 : i32
    return %c0_i32, %c0_i32_0 : i32, i32
  }
  func.func @transform_1(%arg0: i32, %arg1: i32) -> (i32, i32) {
    %c0_i32 = arith.constant 0 : i32
    %c0_i32_0 = arith.constant 0 : i32
    %c0_i32_1 = arith.constant 0 : i32
    return %c0_i32, %c0_i32_0 : i32, i32
  }
  func.func @transform_2(%arg0: i32, %arg1: i32) -> (i32, i32) {
    %c0_i32 = arith.constant 0 : i32
    return %arg0, %arg1 : i32, i32
  }
  func.func @transform_3(%arg0: i32, %arg1: i32) -> (i32, i32) {
    %c0_i32 = arith.constant 0 : i32
    return %arg0, %arg1 : i32, i32
  }
}

</mosaic_0001>

<llo_original>
// kernel: lowpass_filter.1
$region0: #{lowpass_filter.1}
  #allocation0 [shape = 'u32[]', space=smem, size = 0x4, offset = 0x4, fixed_abs, tag = 'smem constant byte address 0x4 - core index']
  #allocation1 [shape = 'u32[144,128]{1,0:T(1,128)}', space=vmem, size = 0x12000, scoped, tag = 'internal scratch']
  #allocation2 [shape = 'f32[8,8]{1,0:T(8,128)}', space=vmem, size = 0x1000, scoped, tag = 'scratch operand']
  %s0 = inlined_call_operand.hbm [shape: f32[128,128], index: 0, kind: input, shape index: {}]
  %s1 = inlined_call_operand.vmem [shape: f32[8,128], index: 1, kind: input, shape index: {}]
  %s2 = inlined_call_operand.vmem [shape: f32[8,256], index: 2, kind: input, shape index: {}]
  %s3 = inlined_call_operand.vmem [shape: f32[8,256], index: 3, kind: output, shape index: {}]
  %s4 = sld [smem:[#allocation0]]
  $region53: #{lowpass_filter.1} parent=0
    _
  %s6 = ssub.s32 1, %s4
  %s7 = scalar_select 0, %s6, %s4
  $region1: #{lowpass_filter.1} parent=0
    #allocation3 [shape = 'u8[65536]{0}', space=vmem, size = 0x10000, scoped, tag = 'input window, operand 0, single buffered']
    #allocation4 [shape = 's32[2]{0}', space=sflag, size = 0x8, scoped, tag = 'scoped memory for lowpass_filter.1']
    %8 = vsyncpa [#allocation4], 0
    loop: start=0, step=1, limit=4
    $region2: #{lowpass_filter.1} parent=1 // loop_pre_header
      _
    $region3: #{lowpass_filter.1} parent=1 // loop_header
      %s10 = sphi 0, %s14
      %p11 = scmp.ge.s32.totalorder %s10, 4
      %s17 = sphi 0, %s29
      %s18 = sphi 0, %s25
      %s19 = sphi 0, %s17
      %s20 = sphi 0, %s18
      %s21 = sphi 0, %s19
      %s22 = sphi 0, %s20
      %s30 = sphi 0, %s30
      %s32 = sphi 0, %s30
      %s33 = sphi 0, %s32
      %s47 = sphi 0, %s33
      %s51 = sphi 0, %s51
      %s53 = sphi 0, %s51
      %s54 = sphi 0, %s53
      %s68 = sphi 0, %s54
      %s76 = sphi 0, %s78
      %s79 = sphi 0, %s76
      %s80 = sphi 0, %s79
      %s96 = sphi 0, %s80
      %s104 = sphi 0, %s106
      %s107 = sphi 0, %s104
      %s108 = sphi 0, %s107
      %s124 = sphi 0, %s108
    $region4: #{lowpass_filter.1} parent=1 // loop_header_branch
      %13 = sbr.rel (%p11) target = $region8
    $region5: #{lowpass_filter.1} parent=1 // loop_body
      %s15 = ssub.s32 %s10, 1
      %s16 = ssub.s32 %s10, 2
      %s23 = sadd.s32 1, %s18
      %p24 = scmp.ge.s32.totalorder %s23, 2
      %s25 = scalar_select %p24, 0, %s23
      %s26 = sadd.s32 1, %s17
      %s27 = scalar_select %p24, %s26, %s17
      %p28 = scmp.ge.s32.totalorder %s27, 1
      %s29 = scalar_select %p28, 0, %s27
      %s31 = sadd.s32 %s30, 1
      %p34 = scmp.eq.s32.totalorder %s10, 1
      %p35 = scmp.ne.s32.totalorder %s30, %s32
      %p36 = scmp.eq.s32.totalorder %s10, 0
      %p37 = por %p35, %p36
      %p38 = scmp.ne.s32.totalorder %s30, %s32
      %p39 = scmp.eq.s32.totalorder %s15, 1
      %p40 = por %p38, %p39
      %p41 = scmp.ne.s32.totalorder %s32, %s33
      %p42 = scmp.eq.s32.totalorder %s15, 0
      %p43 = por %p41, %p42
      %p44 = scmp.ne.s32.totalorder %s32, %s33
      %p45 = scmp.eq.s32.totalorder %s16, 1
      %p46 = por %p44, %p45
      %p48 = scmp.ne.s32.totalorder %s33, %s47
      %p49 = scmp.eq.s32.totalorder %s16, 0
      %p50 = por %p48, %p49
      %s52 = sadd.s32 %s51, 1
      %p55 = scmp.eq.s32.totalorder %s10, 1
      %p56 = scmp.ne.s32.totalorder %s51, %s53
      %p57 = scmp.eq.s32.totalorder %s10, 0
      %p58 = por %p56, %p57
      %p59 = scmp.ne.s32.totalorder %s51, %s53
      %p60 = scmp.eq.s32.totalorder %s15, 1
      %p61 = por %p59, %p60
      %p62 = scmp.ne.s32.totalorder %s53, %s54
      %p63 = scmp.eq.s32.totalorder %s15, 0
      %p64 = por %p62, %p63
      %p65 = scmp.ne.s32.totalorder %s53, %s54
      %p66 = scmp.eq.s32.totalorder %s16, 1
      %p67 = por %p65, %p66
      %p69 = scmp.ne.s32.totalorder %s54, %s68
      %p70 = scmp.eq.s32.totalorder %s16, 0
      %p71 = por %p69, %p70
      %s72 = ssub.s32 %s17, %s29
      %s73 = ssub.s32 %s18, %s25
      %s74 = sor.u32 %s72, %s73
      %p75 = scmp.eq.s32.totalorder %s74, 0
      %s77 = sadd.s32 %s76, 1
      %s78 = scalar_select %p75, %s76, %s77
      %p81 = pneg %p75
      %p82 = scmp.eq.s32.totalorder %s10, 1
      %p83 = por %p81, %p82
      %p84 = scmp.ne.s32.totalorder %s76, %s79
      %p85 = scmp.eq.s32.totalorder %s10, 0
      %p86 = por %p84, %p85
      %p87 = scmp.ne.s32.totalorder %s76, %s79
      %p88 = scmp.eq.s32.totalorder %s15, 1
      %p89 = por %p87, %p88
      %p90 = scmp.ne.s32.totalorder %s79, %s80
      %p91 = scmp.eq.s32.totalorder %s15, 0
      %p92 = por %p90, %p91
      %p93 = scmp.ne.s32.totalorder %s79, %s80
      %p94 = scmp.eq.s32.totalorder %s16, 1
      %p95 = por %p93, %p94
      %p97 = scmp.ne.s32.totalorder %s80, %s96
      %p98 = scmp.eq.s32.totalorder %s16, 0
      %p99 = por %p97, %p98
      %s100 = ssub.s32 %s17, %s29
      %s101 = ssub.s32 %s18, %s25
      %s102 = sor.u32 %s100, %s101
      %p103 = scmp.eq.s32.totalorder %s102, 0
      %s105 = sadd.s32 %s104, 1
      %s106 = scalar_select %p103, %s104, %s105
      %p109 = pneg %p103
      %p110 = scmp.eq.s32.totalorder %s10, 1
      %p111 = por %p109, %p110
      %p112 = scmp.ne.s32.totalorder %s104, %s107
      %p113 = scmp.eq.s32.totalorder %s10, 0
      %p114 = por %p112, %p113
      %p115 = scmp.ne.s32.totalorder %s104, %s107
      %p116 = scmp.eq.s32.totalorder %s15, 1
      %p117 = por %p115, %p116
      %p118 = scmp.ne.s32.totalorder %s107, %s108
      %p119 = scmp.eq.s32.totalorder %s15, 0
      %p120 = por %p118, %p119
      %p121 = scmp.ne.s32.totalorder %s107, %s108
      %p122 = scmp.eq.s32.totalorder %s16, 1
      %p123 = por %p121, %p122
      %p125 = scmp.ne.s32.totalorder %s108, %s124
      %p126 = scmp.eq.s32.totalorder %s16, 0
      %p127 = por %p125, %p126
      %p128 = scmp.le.s32.totalorder 1, %s10
      %p129 = scmp.lt.s32.totalorder %s10, 3
      %p130 = pnand %p128, %p129
      %p131 = pneg %p130
      // Predicated region
      $region9: #{lowpass_filter.1} parent=5 // pred_check
        _
      $region10: #{lowpass_filter.1} parent=5 // pred_check_branch
        %133 = sbr.rel (%p130) target = $region12
      $region11: #{lowpass_filter.1} parent=5 // pred_region
        %s134 = ssub.s32 %s10, 1
        // Predicated region
        $region13: #{lowpass_filter.1} parent=11 // pred_check
          %p135 = pneg %p43
        $region14: #{lowpass_filter.1} parent=11 // pred_check_branch
          %137 = sbr.rel (%p135) target = $region16
        $region15: #{lowpass_filter.1} parent=11 // pred_region
          %s139 = ssub.s32 2048, 2048
          %140 = vsyncadd [#allocation4], %s139
          %s141 = sshll.u32 [#allocation3], 4
          %s142 = int_to_ptr.vmem [resolvable:$true] %s141
          %147 = dma.hbm_to_vmem [thread:$0]  %s0, 2048, %s142, [#allocation4], 128, 128, 8
        $region16: #{lowpass_filter.1} parent=11 // pred_fallthru
          _
        // Predicated region
        $region17: #{lowpass_filter.1} parent=11 // pred_check
          %p148 = pneg %p64
        $region18: #{lowpass_filter.1} parent=11 // pred_check_branch
          %150 = sbr.rel (%p148) target = $region20
        $region19: #{lowpass_filter.1} parent=11 // pred_region
          _
        $region20: #{lowpass_filter.1} parent=11 // pred_fallthru
          _
      $region12: #{lowpass_filter.1} parent=5 // pred_fallthru
        _
      %p151 = scmp.lt.s32.totalorder %s10, 2
      // Predicated region
      $region21: #{lowpass_filter.1} parent=5 // pred_check
        %p152 = pneg %p151
      $region22: #{lowpass_filter.1} parent=5 // pred_check_branch
        %154 = sbr.rel (%p152) target = $region24
      $region23: #{lowpass_filter.1} parent=5 // pred_region
        // Predicated region
        $region25: #{lowpass_filter.1} parent=23 // pred_check
          %p155 = pneg %p86
        $region26: #{lowpass_filter.1} parent=23 // pred_check_branch
          %157 = sbr.rel (%p155) target = $region28
        $region27: #{lowpass_filter.1} parent=23 // pred_region
          %p158 = scmp.lt.s32.totalorder %s17, 0
          %s159 = scalar_select %p158, %s17, 0
          %p160 = scmp.lt.s32.totalorder %s18, 1
          %s161 = scalar_select %p160, %s18, 1
          %s162 = smul.addr %s159, 2
          %s163 = sadd.s32 %s161, %s162
          %s164 = smul.addr %s163, 8
          %s165 = scalar_lea.vmem %s2, %s164
        $region28: #{lowpass_filter.1} parent=23 // pred_fallthru
          _
      $region24: #{lowpass_filter.1} parent=5 // pred_fallthru
        _
      %p166 = scmp.le.s32.totalorder 1, %s10
      %p167 = scmp.lt.s32.totalorder %s10, 3
      %p168 = pnand %p166, %p167
      %p169 = pneg %p168
      // Predicated region
      $region29: #{lowpass_filter.1} parent=5 // pred_check
        _
      $region30: #{lowpass_filter.1} parent=5 // pred_check_branch
        %171 = sbr.rel (%p168) target = $region32
      $region31: #{lowpass_filter.1} parent=5 // pred_region
        %s172 = ssub.s32 %s10, 1
        // Predicated region
        $region33: #{lowpass_filter.1} parent=31 // pred_check
          %p173 = pneg %p43
        $region34: #{lowpass_filter.1} parent=31 // pred_check_branch
          %175 = sbr.rel (%p173) target = $region36
        $region35: #{lowpass_filter.1} parent=31 // pred_region
          %176 = dma.done [#allocation4], 2048
        $region36: #{lowpass_filter.1} parent=31 // pred_fallthru
          _
        %p177 = pneg %p43
        %p178 = pneg %p40
        %p179 = pneg %p64
        %p180 = pneg %p61
        %p181 = scmp.lt.s32.totalorder %s19, 0
        %s182 = scalar_select %p181, %s19, 0
        %p183 = scmp.lt.s32.totalorder %s20, 1
        %s184 = scalar_select %p183, %s20, 1
        %s185 = smul.addr %s182, 2
        %s186 = sadd.s32 %s184, %s185
        %s187 = smul.addr %s186, 8
        %s188 = scalar_lea.vmem %s2, %s187
        %p189 = pneg %p92
        %p190 = pneg %p89
        %p191 = pneg %p120
        %p192 = pneg %p117
        %p193 = scmp.lt.s32.totalorder %s19, 0
        %s194 = scalar_select %p193, %s19, 0
        %p195 = scmp.lt.s32.totalorder %s20, 1
        %s196 = scalar_select %p195, %s20, 1
        %s197 = smul.addr %s194, 2
        %s198 = sadd.s32 %s196, %s197
        %s199 = smul.addr %s198, 8
        %s200 = scalar_lea.vmem %s3, %s199
        %p201 = scmp.lt.s32.totalorder %s19, 0
        %s202 = scalar_select %p201, %s19, 0
        %p203 = scmp.lt.s32.totalorder %s20, 1
        %s204 = scalar_select %p203, %s20, 1
        %s205 = smul.addr %s202, 2
        %s206 = sadd.s32 %s204, %s205
        %s207 = smul.addr %s206, 8
        %s208 = scalar_lea.vmem %s2, %s207
        %p209 = scmp.lt.s32.totalorder %s19, 0
        %s210 = scalar_select %p209, %s19, 0
        %p211 = scmp.lt.s32.totalorder %s20, 1
        %s212 = scalar_select %p211, %s20, 1
        %s213 = smul.addr %s210, 2
        %s214 = sadd.s32 %s212, %s213
        %s215 = smul.addr %s214, 8
        %s216 = scalar_lea.vmem %s3, %s215
        %p217 = scmp.eq.s32.totalorder %s20, 0
        // Predicated region
        $region37: #{lowpass_filter.1} parent=31 // pred_check
          %p218 = pneg %p217
        $region38: #{lowpass_filter.1} parent=31 // pred_check_branch
          %220 = sbr.rel (%p218) target = $region40
        $region39: #{lowpass_filter.1} parent=31 // pred_region
          %vm221 = vcmask 64512
          %222 = vst.msk [vmem:[#allocation2] sm:$0xff] %vm221, 0.0
        $region40: #{lowpass_filter.1} parent=31 // pred_fallthru
          _
        %v223 = vld [vmem:[#allocation3] sm:$0xff]
        %v224 = vld [vmem:[#allocation3 + $0x8] sm:$0xff]
        %v225 = vld [vmem:[#allocation3 + $0x10] sm:$0xff]
        %v226 = vld [vmem:[#allocation3 + $0x18] sm:$0xff]
        %v227 = vld [vmem:[#allocation3 + $0x20] sm:$0xff]
        %v228 = vld [vmem:[#allocation3 + $0x28] sm:$0xff]
        %v229 = vld [vmem:[#allocation3 + $0x30] sm:$0xff]
        %v230 = vld [vmem:[#allocation3 + $0x38] sm:$0xff]
        %v231 = vld [vmem:[#allocation3 + $0x40] sm:$0xff]
        %v232 = vld [vmem:[#allocation3 + $0x48] sm:$0xff]
        %v233 = vld [vmem:[#allocation3 + $0x50] sm:$0xff]
        %v234 = vld [vmem:[#allocation3 + $0x58] sm:$0xff]
        %v235 = vld [vmem:[#allocation3 + $0x60] sm:$0xff]
        %v236 = vld [vmem:[#allocation3 + $0x68] sm:$0xff]
        %v237 = vld [vmem:[#allocation3 + $0x70] sm:$0xff]
        %v238 = vld [vmem:[#allocation3 + $0x78] sm:$0xff]
        %v239 = vld [vmem:[%s1] sm:$0xff]
        %v240 = vld [vmem:[#allocation2] sm:$0xff]
        %v241 = vld [vmem:[%s208] sm:$0xff]
        %vm242 = vcmask 64512
        %v244 = vsel %vm242, %v240, 0
        %246 = vmatprep.subr.mxu0 0.0
        %v247 = vand.u32 %v239, 4294901760
        %248 = vmatpush1.msra.mxu0 %v247
        %249 = vmatprep.subr.mxu0 0.0
        %250 = vmatpush1.msra.mxu0 0.0
        %251 = vmatprep.subr.mxu0 0.0
        %252 = vmatpush1.msra.mxu0 0.0
        %253 = vmatprep.subr.mxu0 0.0
        %254 = vmatpush1.msra.mxu0 0.0
        %255 = vmatprep.subr.mxu0 0.0
        %256 = vmatpush1.msra.mxu0 0.0
        %257 = vmatprep.subr.mxu0 0.0
        %258 = vmatpush1.msra.mxu0 0.0
        %259 = vmatprep.subr.mxu0 0.0
        %260 = vmatpush1.msra.mxu0 0.0
        %261 = vmatprep.subr.mxu0 0.0
        %262 = vmatpush1.msra.mxu0 0.0
        %263 = vmatprep.subr.mxu0 0.0
        %264 = vmatpush1.msra.mxu0 0.0
        %265 = vmatprep.subr.mxu0 0.0
        %266 = vmatpush1.msra.mxu0 0.0
        %267 = vmatprep.subr.mxu0 0.0
        %268 = vmatpush1.msra.mxu0 0.0
        %269 = vmatprep.subr.mxu0 0.0
        %270 = vmatpush1.msra.mxu0 0.0
        %271 = vmatprep.subr.mxu0 0.0
        %272 = vmatpush1.msra.mxu0 0.0
        %273 = vmatprep.subr.mxu0 0.0
        %274 = vmatpush1.msra.mxu0 0.0
        %275 = vmatprep.subr.mxu0 0.0
        %276 = vmatpush1.msra.mxu0 0.0
        %277 = vmatprep.subr.mxu0 0.0
        %278 = vmatpush1.msra.mxu0 0.0
        %279 = vmatprep.subr.mxu0 0.0
        %280 = vmatpush1.msra.mxu0 0.0
        %281 = vmatprep.subr.mxu0 0.0
        %282 = vmatpush1.msra.mxu0 0.0
        %283 = vmatprep.subr.mxu0 0.0
        %284 = vmatpush1.msra.mxu0 0.0
        %285 = vmatprep.subr.mxu0 0.0
        %286 = vmatpush1.msra.mxu0 0.0
        %287 = vmatprep.subr.mxu0 0.0
        %288 = vmatpush1.msra.mxu0 0.0
        %289 = vmatprep.subr.mxu0 0.0
        %290 = vmatpush1.msra.mxu0 0.0
        %291 = vmatprep.subr.mxu0 0.0
        %292 = vmatpush1.msra.mxu0 0.0
        %293 = vmatprep.subr.mxu0 0.0
        %294 = vmatpush1.msra.mxu0 0.0
        %295 = vmatprep.subr.mxu0 0.0
        %296 = vmatpush1.msra.mxu0 0.0
        %297 = vmatprep.subr.mxu0 0.0
        %298 = vmatpush1.msra.mxu0 0.0
        %299 = vmatprep.subr.mxu0 0.0
        %300 = vmatpush1.msra.mxu0 0.0
        %301 = vmatprep.subr.mxu0 0.0
        %302 = vmatpush1.msra.mxu0 0.0
        %303 = vmatprep.subr.mxu0 0.0
        %304 = vmatpush1.msra.mxu0 0.0
        %305 = vmatprep.subr.mxu0 0.0
        %306 = vmatpush1.msra.mxu0 0.0
        %307 = vmatprep.subr.mxu0 0.0
        %308 = vmatpush1.msra.mxu0 0.0
        %309 = vmatprep.subr.mxu0 0.0
        %310 = vmatpush1.msra.mxu0 0.0
        %311 = vmatprep.mubr.f32.mxu0 0.0
        %v312 = vand.u32 %v244, 4294901760
        %v313 = vsub.f32 %v244, %v312
        %v314 = vand.u32 %v313, 4294901760
        %v315 = vsub.f32 %v313, %v314
        %v316 = vand.u32 %v315, 4294901760
        %317 = vmatmul.mubr.f32.gmra.mrb[0].mxu0 %v316
        %v318 = vpop.f32.mrb[0].mxu0
        %v319 = vadd.f32 0.0, %v318
        %v320 = vpop.f32.mrb[0].mxu0
        %321 = vdwg.mxu0
        %322 = vmatprep.subr.mxu0 0.0
        %v323 = vand.u32 %v239, 4294901760
        %v324 = vsub.f32 %v239, %v323
        %v325 = vand.u32 %v324, 4294901760
        %v326 = vsub.f32 %v324, %v325
        %v327 = vand.u32 %v326, 4294901760
        %328 = vmatpush1.msra.mxu0 %v327
        %329 = vmatprep.subr.mxu0 0.0
        %330 = vmatpush1.msra.mxu0 0.0
        %331 = vmatprep.subr.mxu0 0.0
        %332 = vmatpush1.msra.mxu0 0.0
        %333 = vmatprep.subr.mxu0 0.0
        %334 = vmatpush1.msra.mxu0 0.0
        %335 = vmatprep.subr.mxu0 0.0
        %336 = vmatpush1.msra.mxu0 0.0
        %337 = vmatprep.subr.mxu0 0.0
        %338 = vmatpush1.msra.mxu0 0.0
        %339 = vmatprep.subr.mxu0 0.0
        %340 = vmatpush1.msra.mxu0 0.0
        %341 = vmatprep.subr.mxu0 0.0
        %342 = vmatpush1.msra.mxu0 0.0
        %343 = vmatprep.subr.mxu0 0.0
        %344 = vmatpush1.msra.mxu0 0.0
        %345 = vmatprep.subr.mxu0 0.0
        %346 = vmatpush1.msra.mxu0 0.0
        %347 = vmatprep.subr.mxu0 0.0
        %348 = vmatpush1.msra.mxu0 0.0
        %349 = vmatprep.subr.mxu0 0.0
        %350 = vmatpush1.msra.mxu0 0.0
        %351 = vmatprep.subr.mxu0 0.0
        %352 = vmatpush1.msra.mxu0 0.0
        %353 = vmatprep.subr.mxu0 0.0
        %354 = vmatpush1.msra.mxu0 0.0
        %355 = vmatprep.subr.mxu0 0.0
        %356 = vmatpush1.msra.mxu0 0.0
        %357 = vmatprep.subr.mxu0 0.0
        %358 = vmatpush1.msra.mxu0 0.0
        %359 = vmatprep.subr.mxu0 0.0
        %360 = vmatpush1.msra.mxu0 0.0
        %361 = vmatprep.subr.mxu0 0.0
        %362 = vmatpush1.msra.mxu0 0.0
        %363 = vmatprep.subr.mxu0 0.0
        %364 = vmatpush1.msra.mxu0 0.0
        %365 = vmatprep.subr.mxu0 0.0
        %366 = vmatpush1.msra.mxu0 0.0
        %367 = vmatprep.subr.mxu0 0.0
        %368 = vmatpush1.msra.mxu0 0.0
        %369 = vmatprep.subr.mxu0 0.0
        %370 = vmatpush1.msra.mxu0 0.0
        %371 = vmatprep.subr.mxu0 0.0
        %372 = vmatpush1.msra.mxu0 0.0
        %373 = vmatprep.subr.mxu0 0.0
        %374 = vmatpush1.msra.mxu0 0.0
        %375 = vmatprep.subr.mxu0 0.0
        %376 = vmatpush1.msra.mxu0 0.0
        %377 = vmatprep.subr.mxu0 0.0
        %378 = vmatpush1.msra.mxu0 0.0
        %379 = vmatprep.subr.mxu0 0.0
        %380 = vmatpush1.msra.mxu0 0.0
        %381 = vmatprep.subr.mxu0 0.0
        %382 = vmatpush1.msra.mxu0 0.0
        %383 = vmatprep.subr.mxu0 0.0
        %384 = vmatpush1.msra.mxu0 0.0
        %385 = vmatprep.subr.mxu0 0.0
        %386 = vmatpush1.msra.mxu0 0.0
        %387 = vmatprep.subr.mxu0 0.0
        %388 = vmatpush1.msra.mxu0 0.0
        %389 = vmatprep.subr.mxu0 0.0
        %390 = vmatpush1.msra.mxu0 0.0
        %391 = vmatprep.mubr.f32.mxu0 0.0
        %v392 = vand.u32 %v244, 4294901760
        %393 = vmatmul.mubr.f32.gmra.mrb[0].mxu0 %v392
        %v394 = vpop.f32.mrb[0].mxu0
        %v395 = vadd.f32 %v319, %v394
        %v396 = vpop.f32.mrb[0].mxu0
        %397 = vdwg.mxu0
        %398 = vmatprep.subr.mxu0 0.0
        %v399 = vand.u32 %v239, 4294901760
        %v400 = vsub.f32 %v239, %v399
        %401 = vmatpush1.msra.mxu0 %v400
        %402 = vmatprep.subr.mxu0 0.0
        %403 = vmatpush1.msra.mxu0 0.0
        %404 = vmatprep.subr.mxu0 0.0
        %405 = vmatpush1.msra.mxu0 0.0
        %406 = vmatprep.subr.mxu0 0.0
        %407 = vmatpush1.msra.mxu0 0.0
        %408 = vmatprep.subr.mxu0 0.0
        %409 = vmatpush1.msra.mxu0 0.0
        %410 = vmatprep.subr.mxu0 0.0
        %411 = vmatpush1.msra.mxu0 0.0
        %412 = vmatprep.subr.mxu0 0.0
        %413 = vmatpush1.msra.mxu0 0.0
        %414 = vmatprep.subr.mxu0 0.0
        %415 = vmatpush1.msra.mxu0 0.0
        %416 = vmatprep.subr.mxu0 0.0
        %417 = vmatpush1.msra.mxu0 0.0
        %418 = vmatprep.subr.mxu0 0.0
        %419 = vmatpush1.msra.mxu0 0.0
        %420 = vmatprep.subr.mxu0 0.0
        %421 = vmatpush1.msra.mxu0 0.0
        %422 = vmatprep.subr.mxu0 0.0
        %423 = vmatpush1.msra.mxu0 0.0
        %424 = vmatprep.subr.mxu0 0.0
        %425 = vmatpush1.msra.mxu0 0.0
        %426 = vmatprep.subr.mxu0 0.0
        %427 = vmatpush1.msra.mxu0 0.0
        %428 = vmatprep.subr.mxu0 0.0
        %429 = vmatpush1.msra.mxu0 0.0
        %430 = vmatprep.subr.mxu0 0.0
        %431 = vmatpush1.msra.mxu0 0.0
        %432 = vmatprep.subr.mxu0 0.0
        %433 = vmatpush1.msra.mxu0 0.0
        %434 = vmatprep.subr.mxu0 0.0
        %435 = vmatpush1.msra.mxu0 0.0
        %436 = vmatprep.subr.mxu0 0.0
        %437 = vmatpush1.msra.mxu0 0.0
        %438 = vmatprep.subr.mxu0 0.0
        %439 = vmatpush1.msra.mxu0 0.0
        %440 = vmatprep.subr.mxu0 0.0
        %441 = vmatpush1.msra.mxu0 0.0
        %442 = vmatprep.subr.mxu0 0.0
        %443 = vmatpush1.msra.mxu0 0.0
        %444 = vmatprep.subr.mxu0 0.0
        %445 = vmatpush1.msra.mxu0 0.0
        %446 = vmatprep.subr.mxu0 0.0
        %447 = vmatpush1.msra.mxu0 0.0
        %448 = vmatprep.subr.mxu0 0.0
        %449 = vmatpush1.msra.mxu0 0.0
        %450 = vmatprep.subr.mxu0 0.0
        %451 = vmatpush1.msra.mxu0 0.0
        %452 = vmatprep.subr.mxu0 0.0
        %453 = vmatpush1.msra.mxu0 0.0
        %454 = vmatprep.subr.mxu0 0.0
        %455 = vmatpush1.msra.mxu0 0.0
        %456 = vmatprep.subr.mxu0 0.0
        %457 = vmatpush1.msra.mxu0 0.0
        %458 = vmatprep.subr.mxu0 0.0
        %459 = vmatpush1.msra.mxu0 0.0
        %460 = vmatprep.subr.mxu0 0.0
        %461 = vmatpush1.msra.mxu0 0.0
        %462 = vmatprep.subr.mxu0 0.0
        %463 = vmatpush1.msra.mxu0 0.0
        %464 = vmatprep.mubr.f32.mxu0 0.0
        %v465 = vand.u32 %v244, 4294901760
        %v466 = vsub.f32 %v244, %v465
        %467 = vmatmul.mubr.f32.gmra.mrb[0].mxu0 %v466
        %v468 = vpop.f32.mrb[0].mxu0
        %v469 = vadd.f32 %v395, %v468
        %v470 = vpop.f32.mrb[0].mxu0
        %471 = vdwg.mxu0
        %472 = vmatprep.subr.mxu0 0.0
        %v473 = vand.u32 %v239, 4294901760
        %474 = vmatpush1.msra.mxu0 %v473
        %475 = vmatprep.subr.mxu0 0.0
        %476 = vmatpush1.msra.mxu0 0.0
        %477 = vmatprep.subr.mxu0 0.0
        %478 = vmatpush1.msra.mxu0 0.0
        %479 = vmatprep.subr.mxu0 0.0
        %480 = vmatpush1.msra.mxu0 0.0
        %481 = vmatprep.subr.mxu0 0.0
        %482 = vmatpush1.msra.mxu0 0.0
        %483 = vmatprep.subr.mxu0 0.0
        %484 = vmatpush1.msra.mxu0 0.0
        %485 = vmatprep.subr.mxu0 0.0
        %486 = vmatpush1.msra.mxu0 0.0
        %487 = vmatprep.subr.mxu0 0.0
        %488 = vmatpush1.msra.mxu0 0.0
        %489 = vmatprep.subr.mxu0 0.0
        %490 = vmatpush1.msra.mxu0 0.0
        %491 = vmatprep.subr.mxu0 0.0
        %492 = vmatpush1.msra.mxu0 0.0
        %493 = vmatprep.subr.mxu0 0.0
        %494 = vmatpush1.msra.mxu0 0.0
        %495 = vmatprep.subr.mxu0 0.0
        %496 = vmatpush1.msra.mxu0 0.0
        %497 = vmatprep.subr.mxu0 0.0
        %498 = vmatpush1.msra.mxu0 0.0
        %499 = vmatprep.subr.mxu0 0.0
        %500 = vmatpush1.msra.mxu0 0.0
        %501 = vmatprep.subr.mxu0 0.0
        %502 = vmatpush1.msra.mxu0 0.0
        %503 = vmatprep.subr.mxu0 0.0
        %504 = vmatpush1.msra.mxu0 0.0
        %505 = vmatprep.subr.mxu0 0.0
        %506 = vmatpush1.msra.mxu0 0.0
        %507 = vmatprep.subr.mxu0 0.0
        %508 = vmatpush1.msra.mxu0 0.0
        %509 = vmatprep.subr.mxu0 0.0
        %510 = vmatpush1.msra.mxu0 0.0
        %511 = vmatprep.subr.mxu0 0.0
        %512 = vmatpush1.msra.mxu0 0.0
        %513 = vmatprep.subr.mxu0 0.0
        %514 = vmatpush1.msra.mxu0 0.0
        %515 = vmatprep.subr.mxu0 0.0
        %516 = vmatpush1.msra.mxu0 0.0
        %517 = vmatprep.subr.mxu0 0.0
        %518 = vmatpush1.msra.mxu0 0.0
        %519 = vmatprep.subr.mxu0 0.0
        %520 = vmatpush1.msra.mxu0 0.0
        %521 = vmatprep.subr.mxu0 0.0
        %522 = vmatpush1.msra.mxu0 0.0
        %523 = vmatprep.subr.mxu0 0.0
        %524 = vmatpush1.msra.mxu0 0.0
        %525 = vmatprep.subr.mxu0 0.0
        %526 = vmatpush1.msra.mxu0 0.0
        %527 = vmatprep.subr.mxu0 0.0
        %528 = vmatpush1.msra.mxu0 0.0
        %529 = vmatprep.subr.mxu0 0.0
        %530 = vmatpush1.msra.mxu0 0.0
        %531 = vmatprep.subr.mxu0 0.0
        %532 = vmatpush1.msra.mxu0 0.0
        %533 = vmatprep.subr.mxu0 0.0
        %534 = vmatpush1.msra.mxu0 0.0
        %535 = vmatprep.subr.mxu0 0.0
        %536 = vmatpush1.msra.mxu0 0.0
        %537 = vmatprep.mubr.f32.mxu0 0.0
        %v538 = vand.u32 %v244, 4294901760
        %v539 = vsub.f32 %v244, %v538
        %v540 = vand.u32 %v539, 4294901760
        %541 = vmatmul.mubr.f32.gmra.mrb[0].mxu0 %v540
        %v542 = vpop.f32.mrb[0].mxu0
        %v543 = vadd.f32 %v469, %v542
        %v544 = vpop.f32.mrb[0].mxu0
        %545 = vdwg.mxu0
        %546 = vmatprep.subr.mxu0 0.0
        %v547 = vand.u32 %v239, 4294901760
        %v548 = vsub.f32 %v239, %v547
        %v549 = vand.u32 %v548, 4294901760
        %550 = vmatpush1.msra.mxu0 %v549
        %551 = vmatprep.subr.mxu0 0.0
        %552 = vmatpush1.msra.mxu0 0.0
        %553 = vmatprep.subr.mxu0 0.0
        %554 = vmatpush1.msra.mxu0 0.0
        %555 = vmatprep.subr.mxu0 0.0
        %556 = vmatpush1.msra.mxu0 0.0
        %557 = vmatprep.subr.mxu0 0.0
        %558 = vmatpush1.msra.mxu0 0.0
        %559 = vmatprep.subr.mxu0 0.0
        %560 = vmatpush1.msra.mxu0 0.0
        %561 = vmatprep.subr.mxu0 0.0
        %562 = vmatpush1.msra.mxu0 0.0
        %563 = vmatprep.subr.mxu0 0.0
        %564 = vmatpush1.msra.mxu0 0.0
        %565 = vmatprep.subr.mxu0 0.0
        %566 = vmatpush1.msra.mxu0 0.0
        %567 = vmatprep.subr.mxu0 0.0
        %568 = vmatpush1.msra.mxu0 0.0
        %569 = vmatprep.subr.mxu0 0.0
        %570 = vmatpush1.msra.mxu0 0.0
        %571 = vmatprep.subr.mxu0 0.0
        %572 = vmatpush1.msra.mxu0 0.0
        %573 = vmatprep.subr.mxu0 0.0
        %574 = vmatpush1.msra.mxu0 0.0
        %575 = vmatprep.subr.mxu0 0.0
        %576 = vmatpush1.msra.mxu0 0.0
        %577 = vmatprep.subr.mxu0 0.0
        %578 = vmatpush1.msra.mxu0 0.0
        %579 = vmatprep.subr.mxu0 0.0
        %580 = vmatpush1.msra.mxu0 0.0
        %581 = vmatprep.subr.mxu0 0.0
        %582 = vmatpush1.msra.mxu0 0.0
        %583 = vmatprep.subr.mxu0 0.0
        %584 = vmatpush1.msra.mxu0 0.0
        %585 = vmatprep.subr.mxu0 0.0
        %586 = vmatpush1.msra.mxu0 0.0
        %587 = vmatprep.subr.mxu0 0.0
        %588 = vmatpush1.msra.mxu0 0.0
        %589 = vmatprep.subr.mxu0 0.0
        %590 = vmatpush1.msra.mxu0 0.0
        %591 = vmatprep.subr.mxu0 0.0
        %592 = vmatpush1.msra.mxu0 0.0
        %593 = vmatprep.subr.mxu0 0.0
        %594 = vmatpush1.msra.mxu0 0.0
        %595 = vmatprep.subr.mxu0 0.0
        %596 = vmatpush1.msra.mxu0 0.0
        %597 = vmatprep.subr.mxu0 0.0
        %598 = vmatpush1.msra.mxu0 0.0
        %599 = vmatprep.subr.mxu0 0.0
        %600 = vmatpush1.msra.mxu0 0.0
        %601 = vmatprep.subr.mxu0 0.0
        %602 = vmatpush1.msra.mxu0 0.0
        %603 = vmatprep.subr.mxu0 0.0
        %604 = vmatpush1.msra.mxu0 0.0
        %605 = vmatprep.subr.mxu0 0.0
        %606 = vmatpush1.msra.mxu0 0.0
        %607 = vmatprep.subr.mxu0 0.0
        %608 = vmatpush1.msra.mxu0 0.0
        %609 = vmatprep.subr.mxu0 0.0
        %610 = vmatpush1.msra.mxu0 0.0
        %611 = vmatprep.subr.mxu0 0.0
        %612 = vmatpush1.msra.mxu0 0.0
        %613 = vmatprep.mubr.f32.mxu0 0.0
        %v614 = vand.u32 %v244, 4294901760
        %615 = vmatmul.mubr.f32.gmra.mrb[0].mxu0 %v614
        %v616 = vpop.f32.mrb[0].mxu0
        %v617 = vadd.f32 %v543, %v616
        %v618 = vpop.f32.mrb[0].mxu0
        %619 = vdwg.mxu0
        %620 = vmatprep.subr.mxu0 0.0
        %v621 = vand.u32 %v239, 4294901760
        %622 = vmatpush1.msra.mxu0 %v621
        %623 = vmatprep.subr.mxu0 0.0
        %624 = vmatpush1.msra.mxu0 0.0
        %625 = vmatprep.subr.mxu0 0.0
        %626 = vmatpush1.msra.mxu0 0.0
        %627 = vmatprep.subr.mxu0 0.0
        %628 = vmatpush1.msra.mxu0 0.0
        %629 = vmatprep.subr.mxu0 0.0
        %630 = vmatpush1.msra.mxu0 0.0
        %631 = vmatprep.subr.mxu0 0.0
        %632 = vmatpush1.msra.mxu0 0.0
        %633 = vmatprep.subr.mxu0 0.0
        %634 = vmatpush1.msra.mxu0 0.0
        %635 = vmatprep.subr.mxu0 0.0
        %636 = vmatpush1.msra.mxu0 0.0
        %637 = vmatprep.subr.mxu0 0.0
        %638 = vmatpush1.msra.mxu0 0.0
        %639 = vmatprep.subr.mxu0 0.0
        %640 = vmatpush1.msra.mxu0 0.0
        %641 = vmatprep.subr.mxu0 0.0
        %642 = vmatpush1.msra.mxu0 0.0
        %643 = vmatprep.subr.mxu0 0.0
        %644 = vmatpush1.msra.mxu0 0.0
        %645 = vmatprep.subr.mxu0 0.0
        %646 = vmatpush1.msra.mxu0 0.0
        %647 = vmatprep.subr.mxu0 0.0
        %648 = vmatpush1.msra.mxu0 0.0
        %649 = vmatprep.subr.mxu0 0.0
        %650 = vmatpush1.msra.mxu0 0.0
        %651 = vmatprep.subr.mxu0 0.0
        %652 = vmatpush1.msra.mxu0 0.0
        %653 = vmatprep.subr.mxu0 0.0
        %654 = vmatpush1.msra.mxu0 0.0
        %655 = vmatprep.subr.mxu0 0.0
        %656 = vmatpush1.msra.mxu0 0.0
        %657 = vmatprep.subr.mxu0 0.0
        %658 = vmatpush1.msra.mxu0 0.0
        %659 = vmatprep.subr.mxu0 0.0
        %660 = vmatpush1.msra.mxu0 0.0
        %661 = vmatprep.subr.mxu0 0.0
        %662 = vmatpush1.msra.mxu0 0.0
        %663 = vmatprep.subr.mxu0 0.0
        %664 = vmatpush1.msra.mxu0 0.0
        %665 = vmatprep.subr.mxu0 0.0
        %666 = vmatpush1.msra.mxu0 0.0
        %667 = vmatprep.subr.mxu0 0.0
        %668 = vmatpush1.msra.mxu0 0.0
        %669 = vmatprep.subr.mxu0 0.0
        %670 = vmatpush1.msra.mxu0 0.0
        %671 = vmatprep.subr.mxu0 0.0
        %672 = vmatpush1.msra.mxu0 0.0
        %673 = vmatprep.subr.mxu0 0.0
        %674 = vmatpush1.msra.mxu0 0.0
        %675 = vmatprep.subr.mxu0 0.0
        %676 = vmatpush1.msra.mxu0 0.0
        %677 = vmatprep.subr.mxu0 0.0
        %678 = vmatpush1.msra.mxu0 0.0
        %679 = vmatprep.subr.mxu0 0.0
        %680 = vmatpush1.msra.mxu0 0.0
        %681 = vmatprep.subr.mxu0 0.0
        %682 = vmatpush1.msra.mxu0 0.0
        %683 = vmatprep.subr.mxu0 0.0
        %684 = vmatpush1.msra.mxu0 0.0
        %685 = vmatprep.mubr.f32.mxu0 0.0
        %v686 = vand.u32 %v244, 4294901760
        %687 = vmatmul.mubr.f32.gmra.mrb[0].mxu0 %v686
        %v688 = vpop.f32.mrb[0].mxu0
        %v689 = vadd.f32 %v617, %v688
        %v690 = vpop.f32.mrb[0].mxu0
        %691 = vdwg.mxu0
        %692 = vmatprep.subr.mxu0 0.0
        %v693 = vand.u32 %v223, 4294901760
        %694 = vmatpush1.msra.mxu0 %v693
        %695 = vmatprep.subr.mxu0 0.0
        %v696 = vand.u32 %v224, 4294901760
        %697 = vmatpush1.msra.mxu0 %v696
        %698 = vmatprep.subr.mxu0 0.0
        %v699 = vand.u32 %v225, 4294901760
        %700 = vmatpush1.msra.mxu0 %v699
        %701 = vmatprep.subr.mxu0 0.0
        %v702 = vand.u32 %v226, 4294901760
        %703 = vmatpush1.msra.mxu0 %v702
        %704 = vmatprep.subr.mxu0 0.0
        %v705 = vand.u32 %v227, 4294901760
        %706 = vmatpush1.msra.mxu0 %v705
        %707 = vmatprep.subr.mxu0 0.0
        %v708 = vand.u32 %v228, 4294901760
        %709 = vmatpush1.msra.mxu0 %v708
        %710 = vmatprep.subr.mxu0 0.0
        %v711 = vand.u32 %v229, 4294901760
        %712 = vmatpush1.msra.mxu0 %v711
        %713 = vmatprep.subr.mxu0 0.0
        %v714 = vand.u32 %v230, 4294901760
        %715 = vmatpush1.msra.mxu0 %v714
        %716 = vmatprep.subr.mxu0 0.0
        %v717 = vand.u32 %v231, 4294901760
        %718 = vmatpush1.msra.mxu0 %v717
        %719 = vmatprep.subr.mxu0 0.0
        %v720 = vand.u32 %v232, 4294901760
        %721 = vmatpush1.msra.mxu0 %v720
        %722 = vmatprep.subr.mxu0 0.0
        %v723 = vand.u32 %v233, 4294901760
        %724 = vmatpush1.msra.mxu0 %v723
        %725 = vmatprep.subr.mxu0 0.0
        %v726 = vand.u32 %v234, 4294901760
        %727 = vmatpush1.msra.mxu0 %v726
        %728 = vmatprep.subr.mxu0 0.0
        %v729 = vand.u32 %v235, 4294901760
        %730 = vmatpush1.msra.mxu0 %v729
        %731 = vmatprep.subr.mxu0 0.0
        %v732 = vand.u32 %v236, 4294901760
        %733 = vmatpush1.msra.mxu0 %v732
        %734 = vmatprep.subr.mxu0 0.0
        %v735 = vand.u32 %v237, 4294901760
        %736 = vmatpush1.msra.mxu0 %v735
        %737 = vmatprep.subr.mxu0 0.0
        %v738 = vand.u32 %v238, 4294901760
        %739 = vmatpush1.msra.mxu0 %v738
        %740 = vmatprep.subr.mxu0 0.0
        %741 = vmatpush1.msra.mxu0 0.0
        %742 = vmatprep.subr.mxu0 0.0
        %743 = vmatpush1.msra.mxu0 0.0
        %744 = vmatprep.subr.mxu0 0.0
        %745 = vmatpush1.msra.mxu0 0.0
        %746 = vmatprep.subr.mxu0 0.0
        %747 = vmatpush1.msra.mxu0 0.0
        %748 = vmatprep.subr.mxu0 0.0
        %749 = vmatpush1.msra.mxu0 0.0
        %750 = vmatprep.subr.mxu0 0.0
        %751 = vmatpush1.msra.mxu0 0.0
        %752 = vmatprep.subr.mxu0 0.0
        %753 = vmatpush1.msra.mxu0 0.0
        %754 = vmatprep.subr.mxu0 0.0
        %755 = vmatpush1.msra.mxu0 0.0
        %756 = vmatprep.subr.mxu0 0.0
        %757 = vmatpush1.msra.mxu0 0.0
        %758 = vmatprep.subr.mxu0 0.0
        %759 = vmatpush1.msra.mxu0 0.0
        %760 = vmatprep.subr.mxu0 0.0
        %761 = vmatpush1.msra.mxu0 0.0
        %762 = vmatprep.subr.mxu0 0.0
        %763 = vmatpush1.msra.mxu0 0.0
        %764 = vmatprep.subr.mxu0 0.0
        %765 = vmatpush1.msra.mxu0 0.0
        %766 = vmatprep.subr.mxu0 0.0
        %767 = vmatpush1.msra.mxu0 0.0
        %768 = vmatprep.subr.mxu0 0.0
        %769 = vmatpush1.msra.mxu0 0.0
        %770 = vmatprep.subr.mxu0 0.0
        %771 = vmatpush1.msra.mxu0 0.0
        %772 = vmatprep.mubr.f32.mxu0 0.0
        %v773 = vand.u32 %v241, 4294901760
        %v774 = vsub.f32 %v241, %v773
        %v775 = vand.u32 %v774, 4294901760
        %v776 = vsub.f32 %v774, %v775
        %v777 = vand.u32 %v776, 4294901760
        %778 = vmatmul.mubr.f32.gmra.mrb[0].mxu0 %v777
        %v779 = vpop.f32.mrb[0].mxu0
        %v780 = vadd.f32 %v689, %v779
        %v781 = vpop.f32.mrb[0].mxu0
        %782 = vdwg.mxu0
        %783 = vmatprep.subr.mxu0 0.0
        %v784 = vand.u32 %v223, 4294901760
        %v785 = vsub.f32 %v223, %v784
        %v786 = vand.u32 %v785, 4294901760
        %v787 = vsub.f32 %v785, %v786
        %v788 = vand.u32 %v787, 4294901760
        %789 = vmatpush1.msra.mxu0 %v788
        %790 = vmatprep.subr.mxu0 0.0
        %v791 = vand.u32 %v224, 4294901760
        %v792 = vsub.f32 %v224, %v791
        %v793 = vand.u32 %v792, 4294901760
        %v794 = vsub.f32 %v792, %v793
        %v795 = vand.u32 %v794, 4294901760
        %796 = vmatpush1.msra.mxu0 %v795
        %797 = vmatprep.subr.mxu0 0.0
        %v798 = vand.u32 %v225, 4294901760
        %v799 = vsub.f32 %v225, %v798
        %v800 = vand.u32 %v799, 4294901760
        %v801 = vsub.f32 %v799, %v800
        %v802 = vand.u32 %v801, 4294901760
        %803 = vmatpush1.msra.mxu0 %v802
        %804 = vmatprep.subr.mxu0 0.0
        %v805 = vand.u32 %v226, 4294901760
        %v806 = vsub.f32 %v226, %v805
        %v807 = vand.u32 %v806, 4294901760
        %v808 = vsub.f32 %v806, %v807
        %v809 = vand.u32 %v808, 4294901760
        %810 = vmatpush1.msra.mxu0 %v809
        %811 = vmatprep.subr.mxu0 0.0
        %v812 = vand.u32 %v227, 4294901760
        %v813 = vsub.f32 %v227, %v812
        %v814 = vand.u32 %v813, 4294901760
        %v815 = vsub.f32 %v813, %v814
        %v816 = vand.u32 %v815, 4294901760
        %817 = vmatpush1.msra.mxu0 %v816
        %818 = vmatprep.subr.mxu0 0.0
        %v819 = vand.u32 %v228, 4294901760
        %v820 = vsub.f32 %v228, %v819
        %v821 = vand.u32 %v820, 4294901760
        %v822 = vsub.f32 %v820, %v821
        %v823 = vand.u32 %v822, 4294901760
        %824 = vmatpush1.msra.mxu0 %v823
        %825 = vmatprep.subr.mxu0 0.0
        %v826 = vand.u32 %v229, 4294901760
        %v827 = vsub.f32 %v229, %v826
        %v828 = vand.u32 %v827, 4294901760
        %v829 = vsub.f32 %v827, %v828
        %v830 = vand.u32 %v829, 4294901760
        %831 = vmatpush1.msra.mxu0 %v830
        %832 = vmatprep.subr.mxu0 0.0
        %v833 = vand.u32 %v230, 4294901760
        %v834 = vsub.f32 %v230, %v833
        %v835 = vand.u32 %v834, 4294901760
        %v836 = vsub.f32 %v834, %v835
        %v837 = vand.u32 %v836, 4294901760
        %838 = vmatpush1.msra.mxu0 %v837
        %839 = vmatprep.subr.mxu0 0.0
        %v840 = vand.u32 %v231, 4294901760
        %v841 = vsub.f32 %v231, %v840
        %v842 = vand.u32 %v841, 4294901760
        %v843 = vsub.f32 %v841, %v842
        %v844 = vand.u32 %v843, 4294901760
        %845 = vmatpush1.msra.mxu0 %v844
        %846 = vmatprep.subr.mxu0 0.0
        %v847 = vand.u32 %v232, 4294901760
        %v848 = vsub.f32 %v232, %v847
        %v849 = vand.u32 %v848, 4294901760
        %v850 = vsub.f32 %v848, %v849
        %v851 = vand.u32 %v850, 4294901760
        %852 = vmatpush1.msra.mxu0 %v851
        %853 = vmatprep.subr.mxu0 0.0
        %v854 = vand.u32 %v233, 4294901760
        %v855 = vsub.f32 %v233, %v854
        %v856 = vand.u32 %v855, 4294901760
        %v857 = vsub.f32 %v855, %v856
        %v858 = vand.u32 %v857, 4294901760
        %859 = vmatpush1.msra.mxu0 %v858
        %860 = vmatprep.subr.mxu0 0.0
        %v861 = vand.u32 %v234, 4294901760
        %v862 = vsub.f32 %v234, %v861
        %v863 = vand.u32 %v862, 4294901760
        %v864 = vsub.f32 %v862, %v863
        %v865 = vand.u32 %v864, 4294901760
        %866 = vmatpush1.msra.mxu0 %v865
        %867 = vmatprep.subr.mxu0 0.0
        %v868 = vand.u32 %v235, 4294901760
        %v869 = vsub.f32 %v235, %v868
        %v870 = vand.u32 %v869, 4294901760
        %v871 = vsub.f32 %v869, %v870
        %v872 = vand.u32 %v871, 4294901760
        %873 = vmatpush1.msra.mxu0 %v872
        %874 = vmatprep.subr.mxu0 0.0
        %v875 = vand.u32 %v236, 4294901760
        %v876 = vsub.f32 %v236, %v875
        %v877 = vand.u32 %v876, 4294901760
        %v878 = vsub.f32 %v876, %v877
        %v879 = vand.u32 %v878, 4294901760
        %880 = vmatpush1.msra.mxu0 %v879
        %881 = vmatprep.subr.mxu0 0.0
        %v882 = vand.u32 %v237, 4294901760
        %v883 = vsub.f32 %v237, %v882
        %v884 = vand.u32 %v883, 4294901760
        %v885 = vsub.f32 %v883, %v884
        %v886 = vand.u32 %v885, 4294901760
        %887 = vmatpush1.msra.mxu0 %v886
        %888 = vmatprep.subr.mxu0 0.0
        %v889 = vand.u32 %v238, 4294901760
        %v890 = vsub.f32 %v238, %v889
        %v891 = vand.u32 %v890, 4294901760
        %v892 = vsub.f32 %v890, %v891
        %v893 = vand.u32 %v892, 4294901760
        %894 = vmatpush1.msra.mxu0 %v893
        %895 = vmatprep.subr.mxu0 0.0
        %896 = vmatpush1.msra.mxu0 0.0
        %897 = vmatprep.subr.mxu0 0.0
        %898 = vmatpush1.msra.mxu0 0.0
        %899 = vmatprep.subr.mxu0 0.0
        %900 = vmatpush1.msra.mxu0 0.0
        %901 = vmatprep.subr.mxu0 0.0
        %902 = vmatpush1.msra.mxu0 0.0
        %903 = vmatprep.subr.mxu0 0.0
        %904 = vmatpush1.msra.mxu0 0.0
        %905 = vmatprep.subr.mxu0 0.0
        %906 = vmatpush1.msra.mxu0 0.0
        %907 = vmatprep.subr.mxu0 0.0
        %908 = vmatpush1.msra.mxu0 0.0
        %909 = vmatprep.subr.mxu0 0.0
        %910 = vmatpush1.msra.mxu0 0.0
        %911 = vmatprep.subr.mxu0 0.0
        %912 = vmatpush1.msra.mxu0 0.0
        %913 = vmatprep.subr.mxu0 0.0
        %914 = vmatpush1.msra.mxu0 0.0
        %915 = vmatprep.subr.mxu0 0.0
        %916 = vmatpush1.msra.mxu0 0.0
        %917 = vmatprep.subr.mxu0 0.0
        %918 = vmatpush1.msra.mxu0 0.0
        %919 = vmatprep.subr.mxu0 0.0
        %920 = vmatpush1.msra.mxu0 0.0
        %921 = vmatprep.subr.mxu0 0.0
        %922 = vmatpush1.msra.mxu0 0.0
        %923 = vmatprep.subr.mxu0 0.0
        %924 = vmatpush1.msra.mxu0 0.0
        %925 = vmatprep.subr.mxu0 0.0
        %926 = vmatpush1.msra.mxu0 0.0
        %927 = vmatprep.mubr.f32.mxu0 0.0
        %v928 = vand.u32 %v241, 4294901760
        %929 = vmatmul.mubr.f32.gmra.mrb[0].mxu0 %v928
        %v930 = vpop.f32.mrb[0].mxu0
        %v931 = vadd.f32 %v780, %v930
        %v932 = vpop.f32.mrb[0].mxu0
        %933 = vdwg.mxu0
        %934 = vmatprep.subr.mxu0 0.0
        %v935 = vand.u32 %v223, 4294901760
        %v936 = vsub.f32 %v223, %v935
        %937 = vmatpush1.msra.mxu0 %v936
        %938 = vmatprep.subr.mxu0 0.0
        %v939 = vand.u32 %v224, 4294901760
        %v940 = vsub.f32 %v224, %v939
        %941 = vmatpush1.msra.mxu0 %v940
        %942 = vmatprep.subr.mxu0 0.0
        %v943 = vand.u32 %v225, 4294901760
        %v944 = vsub.f32 %v225, %v943
        %945 = vmatpush1.msra.mxu0 %v944
        %946 = vmatprep.subr.mxu0 0.0
        %v947 = vand.u32 %v226, 4294901760
        %v948 = vsub.f32 %v226, %v947
        %949 = vmatpush1.msra.mxu0 %v948
        %950 = vmatprep.subr.mxu0 0.0
        %v951 = vand.u32 %v227, 4294901760
        %v952 = vsub.f32 %v227, %v951
        %953 = vmatpush1.msra.mxu0 %v952
        %954 = vmatprep.subr.mxu0 0.0
        %v955 = vand.u32 %v228, 4294901760
        %v956 = vsub.f32 %v228, %v955
        %957 = vmatpush1.msra.mxu0 %v956
        %958 = vmatprep.subr.mxu0 0.0
        %v959 = vand.u32 %v229, 4294901760
        %v960 = vsub.f32 %v229, %v959
        %961 = vmatpush1.msra.mxu0 %v960
        %962 = vmatprep.subr.mxu0 0.0
        %v963 = vand.u32 %v230, 4294901760
        %v964 = vsub.f32 %v230, %v963
        %965 = vmatpush1.msra.mxu0 %v964
        %966 = vmatprep.subr.mxu0 0.0
        %v967 = vand.u32 %v231, 4294901760
        %v968 = vsub.f32 %v231, %v967
        %969 = vmatpush1.msra.mxu0 %v968
        %970 = vmatprep.subr.mxu0 0.0
        %v971 = vand.u32 %v232, 4294901760
        %v972 = vsub.f32 %v232, %v971
        %973 = vmatpush1.msra.mxu0 %v972
        %974 = vmatprep.subr.mxu0 0.0
        %v975 = vand.u32 %v233, 4294901760
        %v976 = vsub.f32 %v233, %v975
        %977 = vmatpush1.msra.mxu0 %v976
        %978 = vmatprep.subr.mxu0 0.0
        %v979 = vand.u32 %v234, 4294901760
        %v980 = vsub.f32 %v234, %v979
        %981 = vmatpush1.msra.mxu0 %v980
        %982 = vmatprep.subr.mxu0 0.0
        %v983 = vand.u32 %v235, 4294901760
        %v984 = vsub.f32 %v235, %v983
        %985 = vmatpush1.msra.mxu0 %v984
        %986 = vmatprep.subr.mxu0 0.0
        %v987 = vand.u32 %v236, 4294901760
        %v988 = vsub.f32 %v236, %v987
        %989 = vmatpush1.msra.mxu0 %v988
        %990 = vmatprep.subr.mxu0 0.0
        %v991 = vand.u32 %v237, 4294901760
        %v992 = vsub.f32 %v237, %v991
        %993 = vmatpush1.msra.mxu0 %v992
        %994 = vmatprep.subr.mxu0 0.0
        %v995 = vand.u32 %v238, 4294901760
        %v996 = vsub.f32 %v238, %v995
        %997 = vmatpush1.msra.mxu0 %v996
        %998 = vmatprep.subr.mxu0 0.0
        %999 = vmatpush1.msra.mxu0 0.0
        %1000 = vmatprep.subr.mxu0 0.0
        %1001 = vmatpush1.msra.mxu0 0.0
        %1002 = vmatprep.subr.mxu0 0.0
        %1003 = vmatpush1.msra.mxu0 0.0
        %1004 = vmatprep.subr.mxu0 0.0
        %1005 = vmatpush1.msra.mxu0 0.0
        %1006 = vmatprep.subr.mxu0 0.0
        %1007 = vmatpush1.msra.mxu0 0.0
        %1008 = vmatprep.subr.mxu0 0.0
        %1009 = vmatpush1.msra.mxu0 0.0
        %1010 = vmatprep.subr.mxu0 0.0
        %1011 = vmatpush1.msra.mxu0 0.0
        %1012 = vmatprep.subr.mxu0 0.0
        %1013 = vmatpush1.msra.mxu0 0.0
        %1014 = vmatprep.subr.mxu0 0.0
        %1015 = vmatpush1.msra.mxu0 0.0
        %1016 = vmatprep.subr.mxu0 0.0
        %1017 = vmatpush1.msra.mxu0 0.0
        %1018 = vmatprep.subr.mxu0 0.0
        %1019 = vmatpush1.msra.mxu0 0.0
        %1020 = vmatprep.subr.mxu0 0.0
        %1021 = vmatpush1.msra.mxu0 0.0
        %1022 = vmatprep.subr.mxu0 0.0
        %1023 = vmatpush1.msra.mxu0 0.0
        %1024 = vmatprep.subr.mxu0 0.0
        %1025 = vmatpush1.msra.mxu0 0.0
        %1026 = vmatprep.subr.mxu0 0.0
        %1027 = vmatpush1.msra.mxu0 0.0
        %1028 = vmatprep.subr.mxu0 0.0
        %1029 = vmatpush1.msra.mxu0 0.0
        %1030 = vmatprep.mubr.f32.mxu0 0.0
        %v1031 = vand.u32 %v241, 4294901760
        %v1032 = vsub.f32 %v241, %v1031
        %1033 = vmatmul.mubr.f32.gmra.mrb[0].mxu0 %v1032
        %v1034 = vpop.f32.mrb[0].mxu0
        %v1035 = vadd.f32 %v931, %v1034
        %v1036 = vpop.f32.mrb[0].mxu0
        %1037 = vdwg.mxu0
        %1038 = vmatprep.subr.mxu0 0.0
        %v1039 = vand.u32 %v223, 4294901760
        %1040 = vmatpush1.msra.mxu0 %v1039
        %1041 = vmatprep.subr.mxu0 0.0
        %v1042 = vand.u32 %v224, 4294901760
        %1043 = vmatpush1.msra.mxu0 %v1042
        %1044 = vmatprep.subr.mxu0 0.0
        %v1045 = vand.u32 %v225, 4294901760
        %1046 = vmatpush1.msra.mxu0 %v1045
        %1047 = vmatprep.subr.mxu0 0.0
        %v1048 = vand.u32 %v226, 4294901760
        %1049 = vmatpush1.msra.mxu0 %v1048
        %1050 = vmatprep.subr.mxu0 0.0
        %v1051 = vand.u32 %v227, 4294901760
        %1052 = vmatpush1.msra.mxu0 %v1051
        %1053 = vmatprep.subr.mxu0 0.0
        %v1054 = vand.u32 %v228, 4294901760
        %1055 = vmatpush1.msra.mxu0 %v1054
        %1056 = vmatprep.subr.mxu0 0.0
        %v1057 = vand.u32 %v229, 4294901760
        %1058 = vmatpush1.msra.mxu0 %v1057
        %1059 = vmatprep.subr.mxu0 0.0
        %v1060 = vand.u32 %v230, 4294901760
        %1061 = vmatpush1.msra.mxu0 %v1060
        %1062 = vmatprep.subr.mxu0 0.0
        %v1063 = vand.u32 %v231, 4294901760
        %1064 = vmatpush1.msra.mxu0 %v1063
        %1065 = vmatprep.subr.mxu0 0.0
        %v1066 = vand.u32 %v232, 4294901760
        %1067 = vmatpush1.msra.mxu0 %v1066
        %1068 = vmatprep.subr.mxu0 0.0
        %v1069 = vand.u32 %v233, 4294901760
        %1070 = vmatpush1.msra.mxu0 %v1069
        %1071 = vmatprep.subr.mxu0 0.0
        %v1072 = vand.u32 %v234, 4294901760
        %1073 = vmatpush1.msra.mxu0 %v1072
        %1074 = vmatprep.subr.mxu0 0.0
        %v1075 = vand.u32 %v235, 4294901760
        %1076 = vmatpush1.msra.mxu0 %v1075
        %1077 = vmatprep.subr.mxu0 0.0
        %v1078 = vand.u32 %v236, 4294901760
        %1079 = vmatpush1.msra.mxu0 %v1078
        %1080 = vmatprep.subr.mxu0 0.0
        %v1081 = vand.u32 %v237, 4294901760
        %1082 = vmatpush1.msra.mxu0 %v1081
        %1083 = vmatprep.subr.mxu0 0.0
        %v1084 = vand.u32 %v238, 4294901760
        %1085 = vmatpush1.msra.mxu0 %v1084
        %1086 = vmatprep.subr.mxu0 0.0
        %1087 = vmatpush1.msra.mxu0 0.0
        %1088 = vmatprep.subr.mxu0 0.0
        %1089 = vmatpush1.msra.mxu0 0.0
        %1090 = vmatprep.subr.mxu0 0.0
        %1091 = vmatpush1.msra.mxu0 0.0
        %1092 = vmatprep.subr.mxu0 0.0
        %1093 = vmatpush1.msra.mxu0 0.0
        %1094 = vmatprep.subr.mxu0 0.0
        %1095 = vmatpush1.msra.mxu0 0.0
        %1096 = vmatprep.subr.mxu0 0.0
        %1097 = vmatpush1.msra.mxu0 0.0
        %1098 = vmatprep.subr.mxu0 0.0
        %1099 = vmatpush1.msra.mxu0 0.0
        %1100 = vmatprep.subr.mxu0 0.0
        %1101 = vmatpush1.msra.mxu0 0.0
        %1102 = vmatprep.subr.mxu0 0.0
        %1103 = vmatpush1.msra.mxu0 0.0
        %1104 = vmatprep.subr.mxu0 0.0
        %1105 = vmatpush1.msra.mxu0 0.0
        %1106 = vmatprep.subr.mxu0 0.0
        %1107 = vmatpush1.msra.mxu0 0.0
        %1108 = vmatprep.subr.mxu0 0.0
        %1109 = vmatpush1.msra.mxu0 0.0
        %1110 = vmatprep.subr.mxu0 0.0
        %1111 = vmatpush1.msra.mxu0 0.0
        %1112 = vmatprep.subr.mxu0 0.0
        %1113 = vmatpush1.msra.mxu0 0.0
        %1114 = vmatprep.subr.mxu0 0.0
        %1115 = vmatpush1.msra.mxu0 0.0
        %1116 = vmatprep.subr.mxu0 0.0
        %1117 = vmatpush1.msra.mxu0 0.0
        %1118 = vmatprep.mubr.f32.mxu0 0.0
        %v1119 = vand.u32 %v241, 4294901760
        %v1120 = vsub.f32 %v241, %v1119
        %v1121 = vand.u32 %v1120, 4294901760
        %1122 = vmatmul.mubr.f32.gmra.mrb[0].mxu0 %v1121
        %v1123 = vpop.f32.mrb[0].mxu0
        %v1124 = vadd.f32 %v1035, %v1123
        %v1125 = vpop.f32.mrb[0].mxu0
        %1126 = vdwg.mxu0
        %1127 = vmatprep.subr.mxu0 0.0
        %v1128 = vand.u32 %v223, 4294901760
        %v1129 = vsub.f32 %v223, %v1128
        %v1130 = vand.u32 %v1129, 4294901760
        %1131 = vmatpush1.msra.mxu0 %v1130
        %1132 = vmatprep.subr.mxu0 0.0
        %v1133 = vand.u32 %v224, 4294901760
        %v1134 = vsub.f32 %v224, %v1133
        %v1135 = vand.u32 %v1134, 4294901760
        %1136 = vmatpush1.msra.mxu0 %v1135
        %1137 = vmatprep.subr.mxu0 0.0
        %v1138 = vand.u32 %v225, 4294901760
        %v1139 = vsub.f32 %v225, %v1138
        %v1140 = vand.u32 %v1139, 4294901760
        %1141 = vmatpush1.msra.mxu0 %v1140
        %1142 = vmatprep.subr.mxu0 0.0
        %v1143 = vand.u32 %v226, 4294901760
        %v1144 = vsub.f32 %v226, %v1143
        %v1145 = vand.u32 %v1144, 4294901760
        %1146 = vmatpush1.msra.mxu0 %v1145
        %1147 = vmatprep.subr.mxu0 0.0
        %v1148 = vand.u32 %v227, 4294901760
        %v1149 = vsub.f32 %v227, %v1148
        %v1150 = vand.u32 %v1149, 4294901760
        %1151 = vmatpush1.msra.mxu0 %v1150
        %1152 = vmatprep.subr.mxu0 0.0
        %v1153 = vand.u32 %v228, 4294901760
        %v1154 = vsub.f32 %v228, %v1153
        %v1155 = vand.u32 %v1154, 4294901760
        %1156 = vmatpush1.msra.mxu0 %v1155
        %1157 = vmatprep.subr.mxu0 0.0
        %v1158 = vand.u32 %v229, 4294901760
        %v1159 = vsub.f32 %v229, %v1158
        %v1160 = vand.u32 %v1159, 4294901760
        %1161 = vmatpush1.msra.mxu0 %v1160
        %1162 = vmatprep.subr.mxu0 0.0
        %v1163 = vand.u32 %v230, 4294901760
        %v1164 = vsub.f32 %v230, %v1163
        %v1165 = vand.u32 %v1164, 4294901760
        %1166 = vmatpush1.msra.mxu0 %v1165
        %1167 = vmatprep.subr.mxu0 0.0
        %v1168 = vand.u32 %v231, 4294901760
        %v1169 = vsub.f32 %v231, %v1168
        %v1170 = vand.u32 %v1169, 4294901760
        %1171 = vmatpush1.msra.mxu0 %v1170
        %1172 = vmatprep.subr.mxu0 0.0
        %v1173 = vand.u32 %v232, 4294901760
        %v1174 = vsub.f32 %v232, %v1173
        %v1175 = vand.u32 %v1174, 4294901760
        %1176 = vmatpush1.msra.mxu0 %v1175
        %1177 = vmatprep.subr.mxu0 0.0
        %v1178 = vand.u32 %v233, 4294901760
        %v1179 = vsub.f32 %v233, %v1178
        %v1180 = vand.u32 %v1179, 4294901760
        %1181 = vmatpush1.msra.mxu0 %v1180
        %1182 = vmatprep.subr.mxu0 0.0
        %v1183 = vand.u32 %v234, 4294901760
        %v1184 = vsub.f32 %v234, %v1183
        %v1185 = vand.u32 %v1184, 4294901760
        %1186 = vmatpush1.msra.mxu0 %v1185
        %1187 = vmatprep.subr.mxu0 0.0
        %v1188 = vand.u32 %v235, 4294901760
        %v1189 = vsub.f32 %v235, %v1188
        %v1190 = vand.u32 %v1189, 4294901760
        %1191 = vmatpush1.msra.mxu0 %v1190
        %1192 = vmatprep.subr.mxu0 0.0
        %v1193 = vand.u32 %v236, 4294901760
        %v1194 = vsub.f32 %v236, %v1193
        %v1195 = vand.u32 %v1194, 4294901760
        %1196 = vmatpush1.msra.mxu0 %v1195
        %1197 = vmatprep.subr.mxu0 0.0
        %v1198 = vand.u32 %v237, 4294901760
        %v1199 = vsub.f32 %v237, %v1198
        %v1200 = vand.u32 %v1199, 4294901760
        %1201 = vmatpush1.msra.mxu0 %v1200
        %1202 = vmatprep.subr.mxu0 0.0
        %v1203 = vand.u32 %v238, 4294901760
        %v1204 = vsub.f32 %v238, %v1203
        %v1205 = vand.u32 %v1204, 4294901760
        %1206 = vmatpush1.msra.mxu0 %v1205
        %1207 = vmatprep.subr.mxu0 0.0
        %1208 = vmatpush1.msra.mxu0 0.0
        %1209 = vmatprep.subr.mxu0 0.0
        %1210 = vmatpush1.msra.mxu0 0.0
        %1211 = vmatprep.subr.mxu0 0.0
        %1212 = vmatpush1.msra.mxu0 0.0
        %1213 = vmatprep.subr.mxu0 0.0
        %1214 = vmatpush1.msra.mxu0 0.0
        %1215 = vmatprep.subr.mxu0 0.0
        %1216 = vmatpush1.msra.mxu0 0.0
        %1217 = vmatprep.subr.mxu0 0.0
        %1218 = vmatpush1.msra.mxu0 0.0
        %1219 = vmatprep.subr.mxu0 0.0
        %1220 = vmatpush1.msra.mxu0 0.0
        %1221 = vmatprep.subr.mxu0 0.0
        %1222 = vmatpush1.msra.mxu0 0.0
        %1223 = vmatprep.subr.mxu0 0.0
        %1224 = vmatpush1.msra.mxu0 0.0
        %1225 = vmatprep.subr.mxu0 0.0
        %1226 = vmatpush1.msra.mxu0 0.0
        %1227 = vmatprep.subr.mxu0 0.0
        %1228 = vmatpush1.msra.mxu0 0.0
        %1229 = vmatprep.subr.mxu0 0.0
        %1230 = vmatpush1.msra.mxu0 0.0
        %1231 = vmatprep.subr.mxu0 0.0
        %1232 = vmatpush1.msra.mxu0 0.0
        %1233 = vmatprep.subr.mxu0 0.0
        %1234 = vmatpush1.msra.mxu0 0.0
        %1235 = vmatprep.subr.mxu0 0.0
        %1236 = vmatpush1.msra.mxu0 0.0
        %1237 = vmatprep.subr.mxu0 0.0
        %1238 = vmatpush1.msra.mxu0 0.0
        %1239 = vmatprep.mubr.f32.mxu0 0.0
        %v1240 = vand.u32 %v241, 4294901760
        %1241 = vmatmul.mubr.f32.gmra.mrb[0].mxu0 %v1240
        %v1242 = vpop.f32.mrb[0].mxu0
        %v1243 = vadd.f32 %v1124, %v1242
        %v1244 = vpop.f32.mrb[0].mxu0
        %1245 = vdwg.mxu0
        %1246 = vmatprep.subr.mxu0 0.0
        %v1247 = vand.u32 %v223, 4294901760
        %1248 = vmatpush1.msra.mxu0 %v1247
        %1249 = vmatprep.subr.mxu0 0.0
        %v1250 = vand.u32 %v224, 4294901760
        %1251 = vmatpush1.msra.mxu0 %v1250
        %1252 = vmatprep.subr.mxu0 0.0
        %v1253 = vand.u32 %v225, 4294901760
        %1254 = vmatpush1.msra.mxu0 %v1253
        %1255 = vmatprep.subr.mxu0 0.0
        %v1256 = vand.u32 %v226, 4294901760
        %1257 = vmatpush1.msra.mxu0 %v1256
        %1258 = vmatprep.subr.mxu0 0.0
        %v1259 = vand.u32 %v227, 4294901760
        %1260 = vmatpush1.msra.mxu0 %v1259
        %1261 = vmatprep.subr.mxu0 0.0
        %v1262 = vand.u32 %v228, 4294901760
        %1263 = vmatpush1.msra.mxu0 %v1262
        %1264 = vmatprep.subr.mxu0 0.0
        %v1265 = vand.u32 %v229, 4294901760
        %1266 = vmatpush1.msra.mxu0 %v1265
        %1267 = vmatprep.subr.mxu0 0.0
        %v1268 = vand.u32 %v230, 4294901760
        %1269 = vmatpush1.msra.mxu0 %v1268
        %1270 = vmatprep.subr.mxu0 0.0
        %v1271 = vand.u32 %v231, 4294901760
        %1272 = vmatpush1.msra.mxu0 %v1271
        %1273 = vmatprep.subr.mxu0 0.0
        %v1274 = vand.u32 %v232, 4294901760
        %1275 = vmatpush1.msra.mxu0 %v1274
        %1276 = vmatprep.subr.mxu0 0.0
        %v1277 = vand.u32 %v233, 4294901760
        %1278 = vmatpush1.msra.mxu0 %v1277
        %1279 = vmatprep.subr.mxu0 0.0
        %v1280 = vand.u32 %v234, 4294901760
        %1281 = vmatpush1.msra.mxu0 %v1280
        %1282 = vmatprep.subr.mxu0 0.0
        %v1283 = vand.u32 %v235, 4294901760
        %1284 = vmatpush1.msra.mxu0 %v1283
        %1285 = vmatprep.subr.mxu0 0.0
        %v1286 = vand.u32 %v236, 4294901760
        %1287 = vmatpush1.msra.mxu0 %v1286
        %1288 = vmatprep.subr.mxu0 0.0
        %v1289 = vand.u32 %v237, 4294901760
        %1290 = vmatpush1.msra.mxu0 %v1289
        %1291 = vmatprep.subr.mxu0 0.0
        %v1292 = vand.u32 %v238, 4294901760
        %1293 = vmatpush1.msra.mxu0 %v1292
        %1294 = vmatprep.subr.mxu0 0.0
        %1295 = vmatpush1.msra.mxu0 0.0
        %1296 = vmatprep.subr.mxu0 0.0
        %1297 = vmatpush1.msra.mxu0 0.0
        %1298 = vmatprep.subr.mxu0 0.0
        %1299 = vmatpush1.msra.mxu0 0.0
        %1300 = vmatprep.subr.mxu0 0.0
        %1301 = vmatpush1.msra.mxu0 0.0
        %1302 = vmatprep.subr.mxu0 0.0
        %1303 = vmatpush1.msra.mxu0 0.0
        %1304 = vmatprep.subr.mxu0 0.0
        %1305 = vmatpush1.msra.mxu0 0.0
        %1306 = vmatprep.subr.mxu0 0.0
        %1307 = vmatpush1.msra.mxu0 0.0
        %1308 = vmatprep.subr.mxu0 0.0
        %1309 = vmatpush1.msra.mxu0 0.0
        %1310 = vmatprep.subr.mxu0 0.0
        %1311 = vmatpush1.msra.mxu0 0.0
        %1312 = vmatprep.subr.mxu0 0.0
        %1313 = vmatpush1.msra.mxu0 0.0
        %1314 = vmatprep.subr.mxu0 0.0
        %1315 = vmatpush1.msra.mxu0 0.0
        %1316 = vmatprep.subr.mxu0 0.0
        %1317 = vmatpush1.msra.mxu0 0.0
        %1318 = vmatprep.subr.mxu0 0.0
        %1319 = vmatpush1.msra.mxu0 0.0
        %1320 = vmatprep.subr.mxu0 0.0
        %1321 = vmatpush1.msra.mxu0 0.0
        %1322 = vmatprep.subr.mxu0 0.0
        %1323 = vmatpush1.msra.mxu0 0.0
        %1324 = vmatprep.subr.mxu0 0.0
        %1325 = vmatpush1.msra.mxu0 0.0
        %1326 = vmatprep.mubr.f32.mxu0 0.0
        %v1327 = vand.u32 %v241, 4294901760
        %1328 = vmatmul.mubr.f32.gmra.mrb[0].mxu0 %v1327
        %v1329 = vpop.f32.mrb[0].mxu0
        %v1330 = vadd.f32 %v1243, %v1329
        %v1331 = vpop.f32.mrb[0].mxu0
        %1332 = vdwg.mxu0
        %v1333 = vmax.f32 %v1330, -1.0
        %v1334 = vmin.f32 %v1333, 1.0
        %1335 = vst [vmem:[%s216] sm:$0xff] %v1334
        %1337 = vrot.lane.b32.xlu0 %v1330, 1
        %v1338 = vpop.permute.xlu0 %1337
        %1340 = vrot.lane.b32.xlu0 %v1330, 3
        %v1341 = vpop.permute.xlu0 %1340
        %1344 = vrot.lane.b32.xlu0 %v241, 3
        %v1345 = vpop.permute.xlu0 %1344
        %1347 = vrot.lane.b32.xlu0 %v241, 5
        %v1348 = vpop.permute.xlu0 %1347
        %vm1350 = vcmask 7168
        %v1351 = vsel %vm1350, %v1338, %v1341
        %vm1352 = vcmask 15360
        %v1353 = vsel %vm1352, %v1351, %v1345
        %vm1354 = vcmask 23552
        %v1355 = vsel %vm1354, %v1353, %v1348
        %vm1356 = vcmask 31744
        %v1357 = vsel %vm1356, %v1355, %v240
        %1358 = vst.msk [vmem:[#allocation2] sm:$0xff] %vm242, %v1357
        %p1359 = scmp.lt.s32.totalorder %s19, 0
        %s1360 = scalar_select %p1359, %s19, 0
        %p1361 = scmp.lt.s32.totalorder %s20, 1
        %s1362 = scalar_select %p1361, %s20, 1
        %s1363 = smul.addr %s1360, 2
        %s1364 = sadd.s32 %s1362, %s1363
        %s1365 = smul.addr %s1364, 8
        %s1366 = scalar_lea.vmem %s3, %s1365
        // Predicated region
        $region41: #{lowpass_filter.1} parent=31 // pred_check
          %p1367 = pneg %p117
        $region42: #{lowpass_filter.1} parent=31 // pred_check_branch
          %1369 = sbr.rel (%p1367) target = $region44
        $region43: #{lowpass_filter.1} parent=31 // pred_region
          _
        $region44: #{lowpass_filter.1} parent=31 // pred_fallthru
          _
      $region32: #{lowpass_filter.1} parent=5 // pred_fallthru
        _
      %p1370 = scmp.le.s32.totalorder 2, %s10
      // Predicated region
      $region45: #{lowpass_filter.1} parent=5 // pred_check
        %p1371 = pneg %p1370
      $region46: #{lowpass_filter.1} parent=5 // pred_check_branch
        %1373 = sbr.rel (%p1371) target = $region48
      $region47: #{lowpass_filter.1} parent=5 // pred_region
        %s1374 = ssub.s32 %s10, 2
        // Predicated region
        $region49: #{lowpass_filter.1} parent=47 // pred_check
          %p1375 = pneg %p123
        $region50: #{lowpass_filter.1} parent=47 // pred_check_branch
          %1377 = sbr.rel (%p1375) target = $region52
        $region51: #{lowpass_filter.1} parent=47 // pred_region
          %p1378 = scmp.lt.s32.totalorder %s21, 0
          %s1379 = scalar_select %p1378, %s21, 0
          %p1380 = scmp.lt.s32.totalorder %s22, 1
          %s1381 = scalar_select %p1380, %s22, 1
          %s1382 = smul.addr %s1379, 2
          %s1383 = sadd.s32 %s1381, %s1382
          %s1384 = smul.addr %s1383, 8
          %s1385 = scalar_lea.vmem %s3, %s1384
        $region52: #{lowpass_filter.1} parent=47 // pred_fallthru
          _
      $region48: #{lowpass_filter.1} parent=5 // pred_fallthru
        _
    $region6: #{lowpass_filter.1} parent=1 // loop_footer
      %s14 = sadd.s32 1, %s10
    $region7: #{lowpass_filter.1} parent=1 // loop_footer_branch
      %9 = sbr.rel target = $region3
    $region8: #{lowpass_filter.1} parent=1 // loop_exit
      _
    %1386 = vsyncpa [#allocation4], 1
    %s1387 = scalar_lea.sflag [#allocation4], 1
    %1388 = vsyncpa %s1387, 1

</llo_original>
